<compile_context>
chip_gen: v7x
topology: tpu7x:2x2x1
jax: 0.10.0
libtpu: 0.0.40
codegen_flags: <defaults>
</compile_context>

<pallas_src>
import jax
import jax.numpy as jnp
from jax.experimental import pallas as pl
from jax.experimental.pallas import tpu as pltpu

LN_EPS = 1e-5


# --------------------------------------------------------------------------- #
# Hardware queries (defensive: fall back to conservative values).
# --------------------------------------------------------------------------- #
def _vmem_capacity_bytes():
    try:
        info = pltpu.get_tpu_info()
        for name in ("vmem_capacity_bytes", "vmem_size_bytes", "vmem_bytes"):
            v = getattr(info, name, None)
            if v:
                return int(v)
    except Exception:
        pass
    return 64 << 20  # conservative (v7x per-TC); v5e/v6e have 128 MiB


def _has_multiple_tensorcores():
    # Only v7x-class chips have 2 TensorCores per chip; keep >=2 grid steps
    # there so megacore "parallel" sharding has work for both cores.
    try:
        info = pltpu.get_tpu_info()
        for name in ("num_cores", "core_count", "tensorcore_count"):
            v = getattr(info, name, None)
            if v is not None:
                return int(v) > 1
    except Exception:
        pass
    try:
        kind = str(getattr(jax.devices()[0], "device_kind", "")).lower()
        return "v7" in kind
    except Exception:
        return False


# --------------------------------------------------------------------------- #
# Kernel
# --------------------------------------------------------------------------- #
def _dy_pointwise_conv_atten_kernel(q_ref, v_ref, wlt_ref, bl_ref,
                                    gamma_ref, beta_ref, o_ref):
    # q_ref / v_ref / o_ref : (bt, N, C)   (full-extent N, C blocks)
    # wlt_ref               : (C, N)       pre-transposed weight_linear weight
    # bl_ref                : (1, N)  f32  weight_linear bias
    # gamma_ref / beta_ref  : (1, C)  f32  LayerNorm affine params
    bt, n, c = q_ref.shape

    # ---- GEMM 1: dy_w[b, n, m] = sum_c q[b, n, c] * Wl[m, c] + bl[m] -------
    if n % 8 == 0:
        # One big (bt*N, C) @ (C, N) matmul (M rows amortize MXU startup).
        q2 = q_ref[...].reshape(bt * n, c)
        dy_w = jnp.dot(q2, wlt_ref[...], preferred_element_type=jnp.float32)
        dy_w = (dy_w + bl_ref[...]).reshape(bt, n, n)
    else:
        # Sublane-unaligned N: avoid the leading-dim collapse reshape.
        wlt_b = jnp.broadcast_to(wlt_ref[...], (bt, c, n))
        dy_w = jnp.einsum("bnc,bcm->bnm", q_ref[...], wlt_b,
                          preferred_element_type=jnp.float32) + bl_ref[...]
    dy_w = dy_w.astype(v_ref.dtype)

    # ---- GEMM 2: out[b, n, c] = sum_m dy_w[b, n, m] * value[b, m, c] -------
    out = jnp.einsum("bnm,bmc->bnc", dy_w, v_ref[...],
                     preferred_element_type=jnp.float32)

    # ---- LayerNorm over the hidden dim (f32, centered two-pass) ------------
    mean = jnp.mean(out, axis=-1, keepdims=True)
    centered = out - mean
    var = jnp.mean(centered * centered, axis=-1, keepdims=True)
    y = centered * jax.lax.rsqrt(var + LN_EPS) * gamma_ref[...] + beta_ref[...]

    o_ref[...] = y.astype(o_ref.dtype)


# --------------------------------------------------------------------------- #
# Wrapper
# --------------------------------------------------------------------------- #
def dy_pointwise_conv_atten(query, value, wl_weight, wl_bias,
                            ln_weight, ln_bias, *, block_b=None,
                            compute_dtype=None):
    """query, value: (B, N, C). wl_weight: (N, C), wl_bias: (N,),
    ln_weight/ln_bias: (C,). Returns (B, N, C) in query's dtype.

    compute_dtype: optional MXU/HBM dtype (e.g. jnp.bfloat16) to halve
    bandwidth on v5e/v6e. Default None keeps the native input dtype."""
    assert query.shape == value.shape
    B, N, C = query.shape
    out_dtype = query.dtype

    kdtype = jnp.dtype(compute_dtype) if compute_dtype is not None else jnp.dtype(out_dtype)
    q = query.astype(kdtype)
    v = value.astype(kdtype)
    # One-time XLA-side transpose so the in-kernel GEMM contracts the RHS on
    # its leading dim (no per-step re-layout of the grid-invariant weight).
    wlt = wl_weight.astype(kdtype).T                       # (C, N)
    bl = wl_bias.astype(jnp.float32).reshape(1, N)         # (1, N)
    gamma = ln_weight.astype(jnp.float32).reshape(1, C)    # (1, C)
    beta = ln_bias.astype(jnp.float32).reshape(1, C)       # (1, C)

    itemsize = kdtype.itemsize

    # --- batches per grid step: VMEM-budgeted, divisor of B ------------------
    per_b = (3 * 2 * N * C * itemsize        # q / v / out blocks, double-buffered
             + 4 * N * (N + C)               # f32 dy_w + f32 pre-LN intermediate
             + N * N * itemsize)             # dy_w cast for GEMM2
    fixed = 2 * N * C * itemsize + 4 * (N + 2 * C) + (1 << 20)  # Wl x2 + params + slack
    vmem_cap = _vmem_capacity_bytes()
    budget = max(per_b, vmem_cap // 2 - fixed)

    if block_b is None:
        bt = max(1, min(B, budget // per_b))
        if _has_multiple_tensorcores() and B >= 2:
            bt = min(bt, max(1, B // 2))     # keep >= 2 grid steps (v7x megacore)
    else:
        bt = max(1, min(B, int(block_b)))
    bt = int(bt)
    while B % bt:                            # largest divisor of B <= bt
        bt -= 1

    est_vmem = fixed + per_b * bt
    vmem_limit = int(min(vmem_cap, max(2 * est_vmem, 16 << 20)))

    cost = pl.CostEstimate(
        flops=4 * B * N * N * C,                               # two GEMMs
        transcendentals=B * N,                                 # rsqrt per row
        bytes_accessed=(3 * B * N * C + N * C) * itemsize + 4 * (N + 2 * C),
    )

    out = pl.pallas_call(
        _dy_pointwise_conv_atten_kernel,
        out_shape=jax.ShapeDtypeStruct((B, N, C), out_dtype),
        grid=(B // bt,),
        in_specs=[
            pl.BlockSpec((bt, N, C), lambda b: (b, 0, 0)),     # query
            pl.BlockSpec((bt, N, C), lambda b: (b, 0, 0)),     # value
            pl.BlockSpec((C, N), lambda b: (0, 0)),            # Wl^T (grid-invariant)
            pl.BlockSpec((1, N), lambda b: (0, 0)),            # weight_linear bias
            pl.BlockSpec((1, C), lambda b: (0, 0)),            # LN gamma
            pl.BlockSpec((1, C), lambda b: (0, 0)),            # LN beta
        ],
        out_specs=pl.BlockSpec((bt, N, C), lambda b: (b, 0, 0)),
        compiler_params=pltpu.CompilerParams(
            dimension_semantics=("parallel",),
            vmem_limit_bytes=vmem_limit),
        cost_estimate=cost,
    )(q, v, wlt, bl, gamma, beta)

    return out


# --------------------------------------------------------------------------- #
# Pure-JAX reference (matches the PyTorch module's forward)
# --------------------------------------------------------------------------- #
def _reference(query, value, wl_weight, wl_bias, ln_weight, ln_bias):
    hi = jax.lax.Precision.HIGHEST
    dy_w = jnp.einsum("bnc,mc->bnm", query, wl_weight, precision=hi) + wl_bias
    out = jnp.einsum("bnm,bmc->bnc", dy_w, value, precision=hi)
    mean = jnp.mean(out, axis=-1, keepdims=True)
    var = jnp.mean((out - mean) ** 2, axis=-1, keepdims=True)
    return (out - mean) * jax.lax.rsqrt(var + LN_EPS) * ln_weight + ln_bias


if __name__ == "__main__":
    # Small shapes consistent with the module: B batches, N proposals, C hidden.
    B, N, C = 2, 8, 32

    key = jax.random.PRNGKey(0)
    k_q, k_v, k_w, k_b = jax.random.split(key, 4)

    query = jax.random.normal(k_q, (B, N, C), dtype=jnp.float32)
    value = jax.random.normal(k_v, (B, N, C), dtype=jnp.float32)

    # Parameter shapes from nn.Linear(C, N) and nn.LayerNorm(C).
    wl_weight = jax.random.normal(k_w, (N, C), dtype=jnp.float32) * (1.0 / jnp.sqrt(C))
    wl_bias = jax.random.normal(k_b, (N,), dtype=jnp.float32) * 0.01
    ln_weight = jnp.ones((C,), dtype=jnp.float32)
    ln_bias = jnp.zeros((C,), dtype=jnp.float32)

    out = dy_pointwise_conv_atten(query, value, wl_weight, wl_bias,
                                  ln_weight, ln_bias)
    out = jax.block_until_ready(out)

    ref = _reference(query, value, wl_weight, wl_bias, ln_weight, ln_bias)
    assert out.shape == (B, N, C)
    assert jnp.allclose(out, ref, atol=2e-3, rtol=2e-3), "mismatch vs reference"

    print("KERNEL_OK")
</pallas_src>

<mosaic_0001>
module attributes {stable_mosaic.version = 11 : i64} {
  func.func @_dy_pointwise_conv_atten_kernel(%arg0: i32, %arg1: memref<2x8x32xf32, #tpu.memory_space<vmem>>, %arg2: memref<2x8x32xf32, #tpu.memory_space<vmem>>, %arg3: memref<32x8xf32, #tpu.memory_space<vmem>>, %arg4: memref<1x8xf32, #tpu.memory_space<vmem>>, %arg5: memref<1x32xf32, #tpu.memory_space<vmem>>, %arg6: memref<1x32xf32, #tpu.memory_space<vmem>>, %arg7: memref<2x8x32xf32, #tpu.memory_space<vmem>>) attributes {dimension_semantics = [#tpu.dimension_semantics<parallel>], iteration_bounds = array<i64: 1>, scalar_prefetch = 0 : i64, scratch_operands = 0 : i64, tpu.core_type = #tpu.core_type<tc>, window_params = [{transform_indices = @transform_0, window_bounds = array<i64: 2, 8, 32>}, {transform_indices = @transform_1, window_bounds = array<i64: 2, 8, 32>}, {pipeline_mode = #tpu.pipeline_mode<synchronous>, transform_indices = @transform_2, window_bounds = array<i64: 32, 8>}, {pipeline_mode = #tpu.pipeline_mode<synchronous>, transform_indices = @transform_3, window_bounds = array<i64: 1, 8>}, {pipeline_mode = #tpu.pipeline_mode<synchronous>, transform_indices = @transform_4, window_bounds = array<i64: 1, 32>}, {pipeline_mode = #tpu.pipeline_mode<synchronous>, transform_indices = @transform_5, window_bounds = array<i64: 1, 32>}, {transform_indices = @transform_6, window_bounds = array<i64: 2, 8, 32>}]} {
    %c0 = arith.constant 0 : index
    %c0_0 = arith.constant 0 : index
    %c0_1 = arith.constant 0 : index
    %0 = vector.load %arg1[%c0, %c0_0, %c0_1] : memref<2x8x32xf32, #tpu.memory_space<vmem>>, vector<2x8x32xf32>
    %1 = vector.shape_cast %0 : vector<2x8x32xf32> to vector<16x32xf32>
    %c0_2 = arith.constant 0 : index
    %c0_3 = arith.constant 0 : index
    %2 = vector.load %arg3[%c0_2, %c0_3] : memref<32x8xf32, #tpu.memory_space<vmem>>, vector<32x8xf32>
    %cst = arith.constant dense<0.000000e+00> : vector<16x8xf32>
    %3 = tpu.matmul %1, %2, %cst {dimension_numbers = #tpu.dot_dimension_numbers<[1], [0], [0], [1], [0, 0, 1, 1], [], []>} : vector<16x32xf32>, vector<32x8xf32>, vector<16x8xf32> -> vector<16x8xf32>
    %c0_4 = arith.constant 0 : index
    %c0_5 = arith.constant 0 : index
    %4 = vector.load %arg4[%c0_4, %c0_5] : memref<1x8xf32, #tpu.memory_space<vmem>>, vector<1x8xf32>
    %5 = vector.broadcast %4 : vector<1x8xf32> to vector<16x8xf32>
    %6 = arith.addf %3, %5 : vector<16x8xf32>
    %7 = vector.shape_cast %6 : vector<16x8xf32> to vector<2x8x8xf32>
    %c0_6 = arith.constant 0 : index
    %c0_7 = arith.constant 0 : index
    %c0_8 = arith.constant 0 : index
    %8 = vector.load %arg2[%c0_6, %c0_7, %c0_8] : memref<2x8x32xf32, #tpu.memory_space<vmem>>, vector<2x8x32xf32>
    "tpu.trace_start"() <{level = 10 : i32, message = "bnm,bmc->bnc"}> : () -> ()
    %cst_9 = arith.constant dense<0.000000e+00> : vector<2x8x32xf32>
    %9 = tpu.matmul %7, %8, %cst_9 {dimension_numbers = #tpu.dot_dimension_numbers<[2], [1], [1], [2], [0, 0, 0, 1, 1, 2], [0], [0]>} : vector<2x8x8xf32>, vector<2x8x32xf32>, vector<2x8x32xf32> -> vector<2x8x32xf32>
    "tpu.trace_stop"() : () -> ()
    %cst_10 = arith.constant dense<0.000000e+00> : vector<2x8xf32>
    %10 = vector.multi_reduction <add>, %9, %cst_10 [2] : vector<2x8x32xf32> to vector<2x8xf32>
    %11 = vector.shape_cast %10 : vector<2x8xf32> to vector<2x8x1xf32>
    %cst_11 = arith.constant 3.200000e+01 : f32
    %12 = vector.broadcast %cst_11 : f32 to vector<2x8x1xf32>
    %13 = arith.divf %11, %12 : vector<2x8x1xf32>
    %14 = vector.broadcast %13 : vector<2x8x1xf32> to vector<2x8x32xf32>
    %15 = arith.subf %9, %14 : vector<2x8x32xf32>
    %16 = arith.mulf %15, %15 : vector<2x8x32xf32>
    %cst_12 = arith.constant dense<0.000000e+00> : vector<2x8xf32>
    %17 = vector.multi_reduction <add>, %16, %cst_12 [2] : vector<2x8x32xf32> to vector<2x8xf32>
    %18 = vector.shape_cast %17 : vector<2x8xf32> to vector<2x8x1xf32>
    %cst_13 = arith.constant 3.200000e+01 : f32
    %19 = vector.broadcast %cst_13 : f32 to vector<2x8x1xf32>
    %20 = arith.divf %18, %19 : vector<2x8x1xf32>
    %cst_14 = arith.constant 9.99999974E-6 : f32
    %21 = vector.broadcast %cst_14 : f32 to vector<2x8x1xf32>
    %22 = arith.addf %20, %21 : vector<2x8x1xf32>
    %23 = math.rsqrt %22 : vector<2x8x1xf32>
    %24 = vector.broadcast %23 : vector<2x8x1xf32> to vector<2x8x32xf32>
    %25 = arith.mulf %15, %24 : vector<2x8x32xf32>
    %c0_15 = arith.constant 0 : index
    %c0_16 = arith.constant 0 : index
    %26 = vector.load %arg5[%c0_15, %c0_16] : memref<1x32xf32, #tpu.memory_space<vmem>>, vector<1x32xf32>
    %27 = vector.shape_cast %26 : vector<1x32xf32> to vector<1x1x32xf32>
    %28 = vector.broadcast %27 : vector<1x1x32xf32> to vector<2x8x32xf32>
    %29 = arith.mulf %25, %28 : vector<2x8x32xf32>
    %c0_17 = arith.constant 0 : index
    %c0_18 = arith.constant 0 : index
    %30 = vector.load %arg6[%c0_17, %c0_18] : memref<1x32xf32, #tpu.memory_space<vmem>>, vector<1x32xf32>
    %31 = vector.shape_cast %30 : vector<1x32xf32> to vector<1x1x32xf32>
    %32 = vector.broadcast %31 : vector<1x1x32xf32> to vector<2x8x32xf32>
    %33 = arith.addf %29, %32 : vector<2x8x32xf32>
    %c0_19 = arith.constant 0 : index
    %c0_20 = arith.constant 0 : index
    %c0_21 = arith.constant 0 : index
    %34 = vector.load %arg7[%c0_19, %c0_20, %c0_21] : memref<2x8x32xf32, #tpu.memory_space<vmem>>, vector<2x8x32xf32>
    tpu.vector_store %arg7[%c0_19, %c0_20, %c0_21], %33 {strides = array<i32>} : memref<2x8x32xf32, #tpu.memory_space<vmem>>, vector<2x8x32xf32>,
    return
  }
  func.func @transform_0(%arg0: i32) -> (i32, i32, i32) {
    %c0_i32 = arith.constant 0 : i32
    %c0_i32_0 = arith.constant 0 : i32
    %c0_i32_1 = arith.constant 0 : i32
    return %arg0, %c0_i32, %c0_i32_0 : i32, i32, i32
  }
  func.func @transform_1(%arg0: i32) -> (i32, i32, i32) {
    %c0_i32 = arith.constant 0 : i32
    %c0_i32_0 = arith.constant 0 : i32
    %c0_i32_1 = arith.constant 0 : i32
    return %arg0, %c0_i32, %c0_i32_0 : i32, i32, i32
  }
  func.func @transform_2(%arg0: i32) -> (i32, i32) {
    %c0_i32 = arith.constant 0 : i32
    %c0_i32_0 = arith.constant 0 : i32
    %c0_i32_1 = arith.constant 0 : i32
    return %c0_i32, %c0_i32_0 : i32, i32
  }
  func.func @transform_3(%arg0: i32) -> (i32, i32) {
    %c0_i32 = arith.constant 0 : i32
    %c0_i32_0 = arith.constant 0 : i32
    %c0_i32_1 = arith.constant 0 : i32
    return %c0_i32, %c0_i32_0 : i32, i32
  }
  func.func @transform_4(%arg0: i32) -> (i32, i32) {
    %c0_i32 = arith.constant 0 : i32
    %c0_i32_0 = arith.constant 0 : i32
    %c0_i32_1 = arith.constant 0 : i32
    return %c0_i32, %c0_i32_0 : i32, i32
  }
  func.func @transform_5(%arg0: i32) -> (i32, i32) {
    %c0_i32 = arith.constant 0 : i32
    %c0_i32_0 = arith.constant 0 : i32
    %c0_i32_1 = arith.constant 0 : i32
    return %c0_i32, %c0_i32_0 : i32, i32
  }
  func.func @transform_6(%arg0: i32) -> (i32, i32, i32) {
    %c0_i32 = arith.constant 0 : i32
    %c0_i32_0 = arith.constant 0 : i32
    %c0_i32_1 = arith.constant 0 : i32
    return %arg0, %c0_i32, %c0_i32_0 : i32, i32, i32
  }
}

</mosaic_0001>

<llo_original>
// kernel: tpu_custom_call.1
$region0: #{tpu_custom_call.1}
  #allocation0 [shape = 'u32[]', space=smem, size = 0x4, offset = 0x4, fixed_abs, tag = 'smem constant byte address 0x4 - core index']
  #allocation1 [shape = 'u32[144,128]{1,0:T(1,128)}', space=vmem, size = 0x12000, scoped, tag = 'internal scratch']
  %s0 = inlined_call_operand.vmem [shape: f32[2,8,32], index: 0, kind: input, shape index: {}]
  %s1 = inlined_call_operand.vmem [shape: f32[2,8,32], index: 1, kind: input, shape index: {}]
  %s2 = inlined_call_operand.vmem [shape: f32[32,8], index: 2, kind: input, shape index: {}]
  %s3 = inlined_call_operand.vmem [shape: f32[1,8], index: 3, kind: input, shape index: {}]
  %s4 = inlined_call_operand.vmem [shape: f32[1,32], index: 4, kind: input, shape index: {}]
  %s5 = inlined_call_operand.vmem [shape: f32[1,32], index: 5, kind: input, shape index: {}]
  %s6 = inlined_call_operand.hbm [shape: f32[2,8,32], index: 6, kind: output, shape index: {}]
  %s7 = sld [smem:[#allocation0]]
  $region34: #{tpu_custom_call.1} parent=0
    _
  %s9 = ssub.s32 1, %s7
  %s10 = scalar_select 0, %s9, %s7
  $region1: #{tpu_custom_call.1} parent=0
    #allocation2 [shape = 'u8[8192]{0}', space=vmem, size = 0x2000, scoped, tag = 'output window, operand 0, single buffered']
    #allocation3 [shape = 's32[1]{0}', space=sflag, size = 0x4, scoped, tag = 'scoped memory for tpu_custom_call.1']
    %11 = vsyncpa [#allocation3], 0
    // Predicated region
    $region2: #{tpu_custom_call.1} parent=1 // pred_check
      _
    $region3: #{tpu_custom_call.1} parent=1 // pred_check_branch
      %13 = sbr.rel (0) target = $region5
    $region4: #{tpu_custom_call.1} parent=1 // pred_region
      _
    $region5: #{tpu_custom_call.1} parent=1 // pred_fallthru
      _
    // Predicated region
    $region6: #{tpu_custom_call.1} parent=1 // pred_check
      _
    $region7: #{tpu_custom_call.1} parent=1 // pred_check_branch
      %15 = sbr.rel (0) target = $region9
    $region8: #{tpu_custom_call.1} parent=1 // pred_region
      _
    $region9: #{tpu_custom_call.1} parent=1 // pred_fallthru
      _
    // Predicated region
    $region10: #{tpu_custom_call.1} parent=1 // pred_check
      _
    $region11: #{tpu_custom_call.1} parent=1 // pred_check_branch
      %17 = sbr.rel (0) target = $region13
    $region12: #{tpu_custom_call.1} parent=1 // pred_region
      _
    $region13: #{tpu_custom_call.1} parent=1 // pred_fallthru
      _
    // Predicated region
    $region14: #{tpu_custom_call.1} parent=1 // pred_check
      _
    $region15: #{tpu_custom_call.1} parent=1 // pred_check_branch
      %19 = sbr.rel (0) target = $region17
    $region16: #{tpu_custom_call.1} parent=1 // pred_region
      _
    $region17: #{tpu_custom_call.1} parent=1 // pred_fallthru
      _
    // Predicated region
    $region18: #{tpu_custom_call.1} parent=1 // pred_check
      _
    $region19: #{tpu_custom_call.1} parent=1 // pred_check_branch
      %21 = sbr.rel (0) target = $region21
    $region20: #{tpu_custom_call.1} parent=1 // pred_region
      _
    $region21: #{tpu_custom_call.1} parent=1 // pred_fallthru
      _
    // Predicated region
    $region22: #{tpu_custom_call.1} parent=1 // pred_check
      _
    $region23: #{tpu_custom_call.1} parent=1 // pred_check_branch
      %23 = sbr.rel (0) target = $region25
    $region24: #{tpu_custom_call.1} parent=1 // pred_region
      _
    $region25: #{tpu_custom_call.1} parent=1 // pred_fallthru
      _
    %v24 = vld [vmem:[%s0] sm:$0xff]
    %v25 = vld [vmem:[%s0 + $0x8] sm:$0xff]
    %v26 = vld [vmem:[%s2] sm:$0xff]
    %v27 = vld [vmem:[%s2 + $0x8] sm:$0xff]
    %v28 = vld [vmem:[%s2 + $0x10] sm:$0xff]
    %v29 = vld [vmem:[%s2 + $0x18] sm:$0xff]
    %v30 = vld [vmem:[%s3] sm:$0x1]
    %v32 = vlaneseq
    %v33 = vshrl.u32 %v32, 7
    %v34 = vsub.s32 0, %v33
    %v35 = vrot.slane %v30, %v34
    %vm37 = vcmask 261120
    %v39 = vsel %vm37, %v24, 0
    %v42 = vsel %vm37, %v25, 0
    %44 = vmatprep.subr.mxu0 0.0
    %45 = vmatpush1.msra.mxu0 %v26
    %46 = vmatprep.subr.mxu0 0.0
    %47 = vmatpush1.msra.mxu0 %v27
    %48 = vmatprep.subr.mxu0 0.0
    %49 = vmatpush1.msra.mxu0 %v28
    %50 = vmatprep.subr.mxu0 0.0
    %51 = vmatpush1.msra.mxu0 %v29
    %52 = vmatprep.subr.mxu0 0.0
    %53 = vmatpush1.msra.mxu0 0.0
    %54 = vmatprep.subr.mxu0 0.0
    %55 = vmatpush1.msra.mxu0 0.0
    %56 = vmatprep.subr.mxu0 0.0
    %57 = vmatpush1.msra.mxu0 0.0
    %58 = vmatprep.subr.mxu0 0.0
    %59 = vmatpush1.msra.mxu0 0.0
    %60 = vmatprep.subr.mxu0 0.0
    %61 = vmatpush1.msra.mxu0 0.0
    %62 = vmatprep.subr.mxu0 0.0
    %63 = vmatpush1.msra.mxu0 0.0
    %64 = vmatprep.subr.mxu0 0.0
    %65 = vmatpush1.msra.mxu0 0.0
    %66 = vmatprep.subr.mxu0 0.0
    %67 = vmatpush1.msra.mxu0 0.0
    %68 = vmatprep.subr.mxu0 0.0
    %69 = vmatpush1.msra.mxu0 0.0
    %70 = vmatprep.subr.mxu0 0.0
    %71 = vmatpush1.msra.mxu0 0.0
    %72 = vmatprep.subr.mxu0 0.0
    %73 = vmatpush1.msra.mxu0 0.0
    %74 = vmatprep.subr.mxu0 0.0
    %75 = vmatpush1.msra.mxu0 0.0
    %76 = vmatprep.subr.mxu0 0.0
    %77 = vmatpush1.msra.mxu0 0.0
    %78 = vmatprep.subr.mxu0 0.0
    %79 = vmatpush1.msra.mxu0 0.0
    %80 = vmatprep.subr.mxu0 0.0
    %81 = vmatpush1.msra.mxu0 0.0
    %82 = vmatprep.subr.mxu0 0.0
    %83 = vmatpush1.msra.mxu0 0.0
    %84 = vmatprep.subr.mxu0 0.0
    %85 = vmatpush1.msra.mxu0 0.0
    %86 = vmatprep.subr.mxu0 0.0
    %87 = vmatpush1.msra.mxu0 0.0
    %88 = vmatprep.subr.mxu0 0.0
    %89 = vmatpush1.msra.mxu0 0.0
    %90 = vmatprep.subr.mxu0 0.0
    %91 = vmatpush1.msra.mxu0 0.0
    %92 = vmatprep.subr.mxu0 0.0
    %93 = vmatpush1.msra.mxu0 0.0
    %94 = vmatprep.subr.mxu0 0.0
    %95 = vmatpush1.msra.mxu0 0.0
    %96 = vmatprep.subr.mxu0 0.0
    %97 = vmatpush1.msra.mxu0 0.0
    %98 = vmatprep.subr.mxu0 0.0
    %99 = vmatpush1.msra.mxu0 0.0
    %100 = vmatprep.subr.mxu0 0.0
    %101 = vmatpush1.msra.mxu0 0.0
    %102 = vmatprep.subr.mxu0 0.0
    %103 = vmatpush1.msra.mxu0 0.0
    %104 = vmatprep.subr.mxu0 0.0
    %105 = vmatpush1.msra.mxu0 0.0
    %106 = vmatprep.subr.mxu0 0.0
    %107 = vmatpush1.msra.mxu0 0.0
    %108 = vmatprep.mubr.f32.mxu0 0.0
    %109 = vmatmul.mubr.f32.gmra.mrb[0].mxu0 %v39
    %v110 = vpop.f32.mrb[0].mxu0
    %v111 = vadd.f32 %v35, %v110
    %v112 = vpop.f32.mrb[0].mxu0
    %113 = vmatprep.mubr.f32.mxu0 0.0
    %114 = vmatmul.mubr.f32.gmra.mrb[0].mxu0 %v42
    %v115 = vpop.f32.mrb[0].mxu0
    %v116 = vadd.f32 %v35, %v115
    %v117 = vpop.f32.mrb[0].mxu0
    %118 = vdwg.mxu0
    %v119 = vld [vmem:[%s1] sm:$0xff]
    %v120 = vld [vmem:[%s1 + $0x8] sm:$0xff]
    %vm121 = vcmask 64512
    %v123 = vsel %vm121, %v111, 0
    %125 = vmatprep.subr.mxu0 0.0
    %126 = vmatpush1.msra.mxu0 %v119
    %127 = vmatprep.subr.mxu0 0.0
    %128 = vmatpush1.msra.mxu0 0.0
    %129 = vmatprep.subr.mxu0 0.0
    %130 = vmatpush1.msra.mxu0 0.0
    %131 = vmatprep.subr.mxu0 0.0
    %132 = vmatpush1.msra.mxu0 0.0
    %133 = vmatprep.subr.mxu0 0.0
    %134 = vmatpush1.msra.mxu0 0.0
    %135 = vmatprep.subr.mxu0 0.0
    %136 = vmatpush1.msra.mxu0 0.0
    %137 = vmatprep.subr.mxu0 0.0
    %138 = vmatpush1.msra.mxu0 0.0
    %139 = vmatprep.subr.mxu0 0.0
    %140 = vmatpush1.msra.mxu0 0.0
    %141 = vmatprep.subr.mxu0 0.0
    %142 = vmatpush1.msra.mxu0 0.0
    %143 = vmatprep.subr.mxu0 0.0
    %144 = vmatpush1.msra.mxu0 0.0
    %145 = vmatprep.subr.mxu0 0.0
    %146 = vmatpush1.msra.mxu0 0.0
    %147 = vmatprep.subr.mxu0 0.0
    %148 = vmatpush1.msra.mxu0 0.0
    %149 = vmatprep.subr.mxu0 0.0
    %150 = vmatpush1.msra.mxu0 0.0
    %151 = vmatprep.subr.mxu0 0.0
    %152 = vmatpush1.msra.mxu0 0.0
    %153 = vmatprep.subr.mxu0 0.0
    %154 = vmatpush1.msra.mxu0 0.0
    %155 = vmatprep.subr.mxu0 0.0
    %156 = vmatpush1.msra.mxu0 0.0
    %157 = vmatprep.subr.mxu0 0.0
    %158 = vmatpush1.msra.mxu0 0.0
    %159 = vmatprep.subr.mxu0 0.0
    %160 = vmatpush1.msra.mxu0 0.0
    %161 = vmatprep.subr.mxu0 0.0
    %162 = vmatpush1.msra.mxu0 0.0
    %163 = vmatprep.subr.mxu0 0.0
    %164 = vmatpush1.msra.mxu0 0.0
    %165 = vmatprep.subr.mxu0 0.0
    %166 = vmatpush1.msra.mxu0 0.0
    %167 = vmatprep.subr.mxu0 0.0
    %168 = vmatpush1.msra.mxu0 0.0
    %169 = vmatprep.subr.mxu0 0.0
    %170 = vmatpush1.msra.mxu0 0.0
    %171 = vmatprep.subr.mxu0 0.0
    %172 = vmatpush1.msra.mxu0 0.0
    %173 = vmatprep.subr.mxu0 0.0
    %174 = vmatpush1.msra.mxu0 0.0
    %175 = vmatprep.subr.mxu0 0.0
    %176 = vmatpush1.msra.mxu0 0.0
    %177 = vmatprep.subr.mxu0 0.0
    %178 = vmatpush1.msra.mxu0 0.0
    %179 = vmatprep.subr.mxu0 0.0
    %180 = vmatpush1.msra.mxu0 0.0
    %181 = vmatprep.subr.mxu0 0.0
    %182 = vmatpush1.msra.mxu0 0.0
    %183 = vmatprep.subr.mxu0 0.0
    %184 = vmatpush1.msra.mxu0 0.0
    %185 = vmatprep.subr.mxu0 0.0
    %186 = vmatpush1.msra.mxu0 0.0
    %187 = vmatprep.subr.mxu0 0.0
    %188 = vmatpush1.msra.mxu0 0.0
    %189 = vmatprep.mubr.f32.mxu0 0.0
    %190 = vmatmul.mubr.f32.gmra.mrb[0].mxu0 %v123
    %v191 = vpop.f32.mrb[0].mxu0
    %v192 = vadd.f32 0.0, %v191
    %v193 = vpop.f32.mrb[0].mxu0
    %194 = vdwg.mxu0
    %v196 = vsel %vm121, %v116, 0
    %198 = vmatprep.subr.mxu0 0.0
    %199 = vmatpush1.msra.mxu0 %v120
    %200 = vmatprep.subr.mxu0 0.0
    %201 = vmatpush1.msra.mxu0 0.0
    %202 = vmatprep.subr.mxu0 0.0
    %203 = vmatpush1.msra.mxu0 0.0
    %204 = vmatprep.subr.mxu0 0.0
    %205 = vmatpush1.msra.mxu0 0.0
    %206 = vmatprep.subr.mxu0 0.0
    %207 = vmatpush1.msra.mxu0 0.0
    %208 = vmatprep.subr.mxu0 0.0
    %209 = vmatpush1.msra.mxu0 0.0
    %210 = vmatprep.subr.mxu0 0.0
    %211 = vmatpush1.msra.mxu0 0.0
    %212 = vmatprep.subr.mxu0 0.0
    %213 = vmatpush1.msra.mxu0 0.0
    %214 = vmatprep.subr.mxu0 0.0
    %215 = vmatpush1.msra.mxu0 0.0
    %216 = vmatprep.subr.mxu0 0.0
    %217 = vmatpush1.msra.mxu0 0.0
    %218 = vmatprep.subr.mxu0 0.0
    %219 = vmatpush1.msra.mxu0 0.0
    %220 = vmatprep.subr.mxu0 0.0
    %221 = vmatpush1.msra.mxu0 0.0
    %222 = vmatprep.subr.mxu0 0.0
    %223 = vmatpush1.msra.mxu0 0.0
    %224 = vmatprep.subr.mxu0 0.0
    %225 = vmatpush1.msra.mxu0 0.0
    %226 = vmatprep.subr.mxu0 0.0
    %227 = vmatpush1.msra.mxu0 0.0
    %228 = vmatprep.subr.mxu0 0.0
    %229 = vmatpush1.msra.mxu0 0.0
    %230 = vmatprep.subr.mxu0 0.0
    %231 = vmatpush1.msra.mxu0 0.0
    %232 = vmatprep.subr.mxu0 0.0
    %233 = vmatpush1.msra.mxu0 0.0
    %234 = vmatprep.subr.mxu0 0.0
    %235 = vmatpush1.msra.mxu0 0.0
    %236 = vmatprep.subr.mxu0 0.0
    %237 = vmatpush1.msra.mxu0 0.0
    %238 = vmatprep.subr.mxu0 0.0
    %239 = vmatpush1.msra.mxu0 0.0
    %240 = vmatprep.subr.mxu0 0.0
    %241 = vmatpush1.msra.mxu0 0.0
    %242 = vmatprep.subr.mxu0 0.0
    %243 = vmatpush1.msra.mxu0 0.0
    %244 = vmatprep.subr.mxu0 0.0
    %245 = vmatpush1.msra.mxu0 0.0
    %246 = vmatprep.subr.mxu0 0.0
    %247 = vmatpush1.msra.mxu0 0.0
    %248 = vmatprep.subr.mxu0 0.0
    %249 = vmatpush1.msra.mxu0 0.0
    %250 = vmatprep.subr.mxu0 0.0
    %251 = vmatpush1.msra.mxu0 0.0
    %252 = vmatprep.subr.mxu0 0.0
    %253 = vmatpush1.msra.mxu0 0.0
    %254 = vmatprep.subr.mxu0 0.0
    %255 = vmatpush1.msra.mxu0 0.0
    %256 = vmatprep.subr.mxu0 0.0
    %257 = vmatpush1.msra.mxu0 0.0
    %258 = vmatprep.subr.mxu0 0.0
    %259 = vmatpush1.msra.mxu0 0.0
    %260 = vmatprep.subr.mxu0 0.0
    %261 = vmatpush1.msra.mxu0 0.0
    %262 = vmatprep.mubr.f32.mxu0 0.0
    %263 = vmatmul.mubr.f32.gmra.mrb[0].mxu0 %v196
    %v264 = vpop.f32.mrb[0].mxu0
    %v265 = vadd.f32 0.0, %v264
    %v266 = vpop.f32.mrb[0].mxu0
    %267 = vdwg.mxu0
    %v268 = vsel %vm37, %v192, 0.0
    %269 = vadd.xlane.f32.xlu0 %v268
    %v270 = vpop.xlane.xlu0 %269
    %v271 = vsel %vm37, %v265, 0.0
    %272 = vadd.xlane.f32.xlu0 %v271
    %v273 = vpop.xlane.xlu0 %272
    %v274 = vrcp.pop 32.0
    %v275 = vmul.f32 %v270, %v274
    %v276 = vmul.f32 %v273, %v274
    %v277 = vsub.f32 %v192, %v275
    %v278 = vsub.f32 %v265, %v276
    %v279 = vmul.f32 %v277, %v277
    %v280 = vmul.f32 %v278, %v278
    %v281 = vsel %vm37, %v279, 0.0
    %282 = vadd.xlane.f32.xlu0 %v281
    %v283 = vpop.xlane.xlu0 %282
    %v284 = vsel %vm37, %v280, 0.0
    %285 = vadd.xlane.f32.xlu0 %v284
    %v286 = vpop.xlane.xlu0 %285
    %v287 = vmul.f32 %v283, %v274
    %v288 = vmul.f32 %v286, %v274
    %v289 = vadd.f32 %v287, 1e-05
    %v290 = vadd.f32 %v288, 1e-05
    %v291 = vrsqrt.pop %v289
    %v292 = vrsqrt.pop %v290
    %v293 = vmul.f32 %v277, %v291
    %v294 = vmul.f32 %v278, %v292
    %v295 = vld [vmem:[%s4] sm:$0x1]
    %v297 = vlaneseq
    %v298 = vshrl.u32 %v297, 7
    %v299 = vsub.s32 0, %v298
    %v300 = vrot.slane %v295, %v299
    %v302 = vmul.f32 %v293, %v300
    %v303 = vmul.f32 %v294, %v300
    %v304 = vld [vmem:[%s5] sm:$0x1]
    %v306 = vlaneseq
    %v307 = vshrl.u32 %v306, 7
    %v308 = vsub.s32 0, %v307
    %v309 = vrot.slane %v304, %v308
    %v311 = vadd.f32 %v302, %v309
    %v312 = vadd.f32 %v303, %v309
    %313 = vst.msk [vmem:[#allocation2] sm:$0xff] %vm37, %v311
    %314 = vst.msk [vmem:[#allocation2 + $0x8] sm:$0xff] %vm37, %v312
    // Predicated region
    $region26: #{tpu_custom_call.1} parent=1 // pred_check
      _
    $region27: #{tpu_custom_call.1} parent=1 // pred_check_branch
      %316 = sbr.rel (0) target = $region29
    $region28: #{tpu_custom_call.1} parent=1 // pred_region
      %s318 = ssub.s32 256, 256
      %319 = vsyncadd [#allocation3], %s318
      %s320 = sshll.u32 [#allocation2], 4
      %s321 = int_to_ptr.vmem [resolvable:$true] %s320
      %326 = dma.vmem_to_hbm [thread:$0]  %s321, 256, %s6, [#allocation3], 128, 128, 8
    $region29: #{tpu_custom_call.1} parent=1 // pred_fallthru
      _
    // Predicated region
    $region30: #{tpu_custom_call.1} parent=1 // pred_check
      _
    $region31: #{tpu_custom_call.1} parent=1 // pred_check_branch
      %328 = sbr.rel (0) target = $region33
    $region32: #{tpu_custom_call.1} parent=1 // pred_region
      %329 = dma.done [#allocation3], 256
    $region33: #{tpu_custom_call.1} parent=1 // pred_fallthru
      _
    %330 = vsyncpa [#allocation3], 1

</llo_original>
